<compile_context>
chip_gen: v5e
topology: v5e:2x2
jax: 0.10.0
libtpu: 0.0.40
codegen_flags: <defaults>
</compile_context>

<pallas_src>
import jax
import jax.numpy as jnp
from jax import lax
from jax.experimental import pallas as pl
from jax.experimental.pallas import tpu as pltpu


def tfs_kernel(tre_ref, tim_ref, ire_ref, iim_ref,   # text / image (re, im)   [bb, N, C]
               pre_ref, pim_ref,                     # select_para (re, im)    [N, C]
               w_ref, b_ref,                         # conv weight^T / N [C,C], bias [1, C]
               ore_ref, oim_ref):                    # outputs (re, im)        [bb, N, C]
    # ---- Image2TextGate ----
    # Gate math always in f32 (activations may be streamed as bf16 by the wrapper).
    ire = ire_ref[...].astype(jnp.float32)
    iim = iim_ref[...].astype(jnp.float32)
    # Real part of (image * view_as_complex(select_para)):  re*p_re - im*p_im.
    # (The imaginary part is dropped by the PyTorch module right after the multiply,
    #  so it is never computed.)
    gated_re = ire * pre_ref[...] - iim * pim_ref[...]            # [bb, N, C]

    # AvgPool1d(kernel_size=N) over N.  The 1/N factor is pre-folded into w_ref by the
    # wrapper, so a plain sum is exact here.
    pooled = jnp.sum(gated_re, axis=1)                            # [bb, C]

    # Conv1d(C, C, kernel_size=1) == pooled @ W.T + b (weight pre-transposed + scaled).
    # HIGHEST precision -> exact f32 MXU matmul (tiny, off the critical path anyway).
    gate = jnp.dot(pooled, w_ref[...],
                   preferred_element_type=jnp.float32,
                   precision=lax.Precision.HIGHEST) + b_ref[...]  # [bb, C]

    # ---- apply gate to text (broadcast over N); gate is real, text is complex ----
    # Hoist the sublane broadcast ONCE and reuse it (JAX does not CSE broadcast_in_dim).
    gate3 = jnp.broadcast_to(gate[:, None, :], ore_ref.shape)     # [bb, N, C]
    ore_ref[...] = (tre_ref[...].astype(jnp.float32) * gate3).astype(ore_ref.dtype)
    oim_ref[...] = (tim_ref[...].astype(jnp.float32) * gate3).astype(oim_ref.dtype)


def _vmem_capacity_bytes():
    """Physical per-TensorCore VMEM; conservative v7x fallback if unqueryable."""
    try:
        return int(pltpu.get_tpu_info().vmem_capacity_bytes)
    except Exception:
        return 64 << 20


def _pick_batch_block(B, N, C, itemsize, *, min_grid_steps=8):
    """Batch tile so the grid has several steps (pipelining + both v7x TCs) while the
    double-buffered streamed working set stays well inside VMEM on v5e/v6e/v7x."""
    if B <= 8:
        return B                                   # tiny batch: one block is the best we can do
    vmem = _vmem_capacity_bytes()
    # 6 streamed [*, N, C] arrays (4 inputs + 2 outputs), double-buffered, <= ~1/3 of VMEM.
    per_row = 6 * 2 * N * C * itemsize
    bb_vmem = max(8, ((vmem // 3) // per_row) // 8 * 8)
    # Keep >= ~min_grid_steps grid steps so DMAs pipeline and megacore has work to shard.
    bb_pipe = max(8, (pl.cdiv(B, min_grid_steps) + 7) // 8 * 8)
    return int(min(bb_vmem, bb_pipe, B))


def text_frequency_selection(text_re, text_im, image_re, image_im,
                             select_re, select_im, conv_w, conv_b,
                             *, batch_block=None):
    """Fused TextFrequencySelection forward.

    text_*, image_*: [B, N, C] float32/bf16 (real/imag parts of the complex inputs)
    select_*:        [N, C]    float32 (real/imag parts of select_para)
    conv_w:          [C, C]    float32 (Conv1d weight, kernel dim squeezed: [C_out, C_in])
    conv_b:          [C]       float32
    """
    B, N, C = text_re.shape
    out_dtype = text_re.dtype
    itemsize = jnp.dtype(out_dtype).itemsize

    # Lane-density guardrail: pad d_model to a multiple of 128 so output stores are
    # unmasked full-lane vst.  Zero-padded weight/bias lanes give a zero gate there,
    # and the padded lanes are sliced off below (exact).
    Cp = max(128, ((C + 127) // 128) * 128)
    if Cp != C:
        pad3 = ((0, 0), (0, 0), (0, Cp - C))
        text_re, text_im, image_re, image_im = (
            jnp.pad(a, pad3) for a in (text_re, text_im, image_re, image_im))
        select_re = jnp.pad(select_re, ((0, 0), (0, Cp - C)))
        select_im = jnp.pad(select_im, ((0, 0), (0, Cp - C)))
        conv_w = jnp.pad(conv_w, ((0, Cp - C), (0, Cp - C)))
        conv_b = jnp.pad(conv_b, ((0, Cp - C),))

    bb = _pick_batch_block(B, N, Cp, itemsize) if batch_block is None else int(batch_block)
    bb = max(1, min(bb, B))
    grid = (pl.cdiv(B, bb),)
    # NOTE: when bb does not divide B, the final partial block computes the gate and
    # outputs on Pallas-padded batch rows.  This is safe because every row of the gate
    # and of the output multiply depends ONLY on that row (no cross-row reduction), and
    # the padded output rows are discarded.  Do not introduce cross-row reductions here
    # without revisiting this.

    # Pre-transpose the 1x1-conv weight so the in-kernel dot is `pooled @ w_t`
    # and fold the avg-pool 1/N factor into it (sum instead of mean in-kernel).
    w_t = (conv_w.T * (1.0 / N)).astype(jnp.float32)              # [C_in, C_out]
    b2 = conv_b.reshape(1, Cp).astype(jnp.float32)                # lane-dense bias row
    select_re = select_re.astype(jnp.float32)
    select_im = select_im.astype(jnp.float32)

    # Explicit scoped-VMEM budget from the real per-step footprint (+ headroom); the
    # defaults (16 MiB v5e / 32 MiB v6e,v7x) would otherwise cap the tile size.
    streamed = 6 * 2 * bb * N * Cp * itemsize                     # 4 in + 2 out, double-buffered
    resident = (2 * N * Cp + Cp * Cp + Cp) * 4                    # select_para + W^T + bias
    vmem_limit = int(1.25 * (streamed + resident)) + (2 << 20)
    vmem_limit = max(vmem_limit, 16 << 20)
    vmem_limit = min(vmem_limit, int(_vmem_capacity_bytes() * 0.9))

    tile3 = pl.BlockSpec((bb, N, Cp), lambda i: (i, 0, 0))        # batch-tiled activations
    par2 = pl.BlockSpec((N, Cp), lambda i: (0, 0))                # select_para (resident)
    wspec = pl.BlockSpec((Cp, Cp), lambda i: (0, 0))              # conv weight (resident)
    bspec = pl.BlockSpec((1, Cp), lambda i: (0, 0))               # conv bias   (resident)

    out_re, out_im = pl.pallas_call(
        tfs_kernel,
        out_shape=(jax.ShapeDtypeStruct((B, N, Cp), out_dtype),
                   jax.ShapeDtypeStruct((B, N, Cp), out_dtype)),
        grid=grid,
        in_specs=[tile3, tile3, tile3, tile3, par2, par2, wspec, bspec],
        out_specs=(tile3, tile3),
        compiler_params=pltpu.CompilerParams(
            dimension_semantics=("parallel",),
            vmem_limit_bytes=vmem_limit),
    )(text_re, text_im, image_re, image_im, select_re, select_im, w_t, b2)

    if Cp != C:
        out_re = out_re[..., :C]
        out_im = out_im[..., :C]
    return out_re, out_im


def tfs_reference(text_re, text_im, image_re, image_im,
                  select_re, select_im, conv_w, conv_b):
    """Pure-JAX reference mirroring the PyTorch forward."""
    gated_re = image_re * select_re - image_im * select_im        # (image * select_para).real
    pooled = jnp.mean(gated_re, axis=1)                           # AvgPool1d(kernel_size=N)
    gate = jnp.dot(pooled, conv_w.T,
                   precision=lax.Precision.HIGHEST) + conv_b      # Conv1d(C, C, k=1)
    gate = gate[:, None, :]                                       # [B, 1, C]
    return text_re * gate, text_im * gate                         # text * image_gate


if __name__ == "__main__":
    B, N, D = 32, 8, 128   # batch, n (freq bins), d_model

    key = jax.random.PRNGKey(0)
    ks = jax.random.split(key, 8)

    # Module inputs: complex text/image represented as (real, imag) float32 pairs.
    text_re = jax.random.normal(ks[0], (B, N, D), dtype=jnp.float32)
    text_im = jax.random.normal(ks[1], (B, N, D), dtype=jnp.float32)
    image_re = jax.random.normal(ks[2], (B, N, D), dtype=jnp.float32)
    image_im = jax.random.normal(ks[3], (B, N, D), dtype=jnp.float32)

    # Parameters (select_para ~ torch.randn(n, d_model, 2); Conv1d weight/bias).
    select_re = jax.random.normal(ks[4], (N, D), dtype=jnp.float32)
    select_im = jax.random.normal(ks[5], (N, D), dtype=jnp.float32)
    conv_w = jax.random.normal(ks[6], (D, D), dtype=jnp.float32) * (1.0 / (D ** 0.5))
    conv_b = jax.random.normal(ks[7], (D,), dtype=jnp.float32) * 0.1

    ref_re, ref_im = tfs_reference(
        text_re, text_im, image_re, image_im, select_re, select_im, conv_w, conv_b)

    # --- main run (batch divides the auto-chosen tile) ---
    out_re, out_im = text_frequency_selection(
        text_re, text_im, image_re, image_im, select_re, select_im, conv_w, conv_b)
    out_re = jax.block_until_ready(out_re)
    out_im = jax.block_until_ready(out_im)

    assert out_re.shape == (B, N, D) and out_im.shape == (B, N, D)
    assert jnp.allclose(out_re, ref_re, atol=3e-5, rtol=3e-5), "real-part mismatch vs reference"
    assert jnp.allclose(out_im, ref_im, atol=3e-5, rtol=3e-5), "imag-part mismatch vs reference"

    # --- non-divisible batch (partial final block): gate/outputs are strictly
    #     row-independent, so padded rows are computed on junk and discarded ---
    Bp = 12
    o2_re, o2_im = text_frequency_selection(
        text_re[:Bp], text_im[:Bp], image_re[:Bp], image_im[:Bp],
        select_re, select_im, conv_w, conv_b)
    o2_re = jax.block_until_ready(o2_re)
    o2_im = jax.block_until_ready(o2_im)
    assert jnp.allclose(o2_re, ref_re[:Bp], atol=3e-5, rtol=3e-5), "partial-block real mismatch"
    assert jnp.allclose(o2_im, ref_im[:Bp], atol=3e-5, rtol=3e-5), "partial-block imag mismatch"

    print("KERNEL_OK")
</pallas_src>

<mosaic_0001>
module attributes {stable_mosaic.version = 11 : i64} {
  func.func @tfs_kernel(%arg0: i32, %arg1: memref<8x8x128xf32, #tpu.memory_space<vmem>>, %arg2: memref<8x8x128xf32, #tpu.memory_space<vmem>>, %arg3: memref<8x8x128xf32, #tpu.memory_space<vmem>>, %arg4: memref<8x8x128xf32, #tpu.memory_space<vmem>>, %arg5: memref<8x128xf32, #tpu.memory_space<vmem>>, %arg6: memref<8x128xf32, #tpu.memory_space<vmem>>, %arg7: memref<128x128xf32, #tpu.memory_space<vmem>>, %arg8: memref<1x128xf32, #tpu.memory_space<vmem>>, %arg9: memref<8x8x128xf32, #tpu.memory_space<vmem>>, %arg10: memref<8x8x128xf32, #tpu.memory_space<vmem>>) attributes {dimension_semantics = [#tpu.dimension_semantics<parallel>], iteration_bounds = array<i64: 4>, scalar_prefetch = 0 : i64, scratch_operands = 0 : i64, tpu.core_type = #tpu.core_type<tc>, window_params = [{transform_indices = @transform_0, window_bounds = array<i64: 8, 8, 128>}, {transform_indices = @transform_1, window_bounds = array<i64: 8, 8, 128>}, {transform_indices = @transform_2, window_bounds = array<i64: 8, 8, 128>}, {transform_indices = @transform_3, window_bounds = array<i64: 8, 8, 128>}, {pipeline_mode = #tpu.pipeline_mode<synchronous>, transform_indices = @transform_4, window_bounds = array<i64: 8, 128>}, {pipeline_mode = #tpu.pipeline_mode<synchronous>, transform_indices = @transform_5, window_bounds = array<i64: 8, 128>}, {pipeline_mode = #tpu.pipeline_mode<synchronous>, transform_indices = @transform_6, window_bounds = array<i64: 128, 128>}, {pipeline_mode = #tpu.pipeline_mode<synchronous>, transform_indices = @transform_7, window_bounds = array<i64: 1, 128>}, {transform_indices = @transform_8, window_bounds = array<i64: 8, 8, 128>}, {transform_indices = @transform_9, window_bounds = array<i64: 8, 8, 128>}]} {
    %c0 = arith.constant 0 : index
    %c0_0 = arith.constant 0 : index
    %c0_1 = arith.constant 0 : index
    %0 = vector.load %arg3[%c0, %c0_0, %c0_1] : memref<8x8x128xf32, #tpu.memory_space<vmem>>, vector<8x8x128xf32>
    %c0_2 = arith.constant 0 : index
    %c0_3 = arith.constant 0 : index
    %c0_4 = arith.constant 0 : index
    %1 = vector.load %arg4[%c0_2, %c0_3, %c0_4] : memref<8x8x128xf32, #tpu.memory_space<vmem>>, vector<8x8x128xf32>
    %c0_5 = arith.constant 0 : index
    %c0_6 = arith.constant 0 : index
    %2 = vector.load %arg5[%c0_5, %c0_6] : memref<8x128xf32, #tpu.memory_space<vmem>>, vector<8x128xf32>
    %3 = vector.shape_cast %2 : vector<8x128xf32> to vector<1x8x128xf32>
    %4 = vector.broadcast %3 : vector<1x8x128xf32> to vector<8x8x128xf32>
    %5 = arith.mulf %0, %4 : vector<8x8x128xf32>
    %c0_7 = arith.constant 0 : index
    %c0_8 = arith.constant 0 : index
    %6 = vector.load %arg6[%c0_7, %c0_8] : memref<8x128xf32, #tpu.memory_space<vmem>>, vector<8x128xf32>
    %7 = vector.shape_cast %6 : vector<8x128xf32> to vector<1x8x128xf32>
    %8 = vector.broadcast %7 : vector<1x8x128xf32> to vector<8x8x128xf32>
    %9 = arith.mulf %1, %8 : vector<8x8x128xf32>
    %10 = arith.subf %5, %9 : vector<8x8x128xf32>
    %cst = arith.constant dense<0.000000e+00> : vector<8x128xf32>
    %11 = vector.multi_reduction <add>, %10, %cst [1] : vector<8x8x128xf32> to vector<8x128xf32>
    %c0_9 = arith.constant 0 : index
    %c0_10 = arith.constant 0 : index
    %12 = vector.load %arg7[%c0_9, %c0_10] : memref<128x128xf32, #tpu.memory_space<vmem>>, vector<128x128xf32>
    %cst_11 = arith.constant dense<0.000000e+00> : vector<8x128xf32>
    %13 = tpu.matmul %11, %12, %cst_11 {dimension_numbers = #tpu.dot_dimension_numbers<[1], [0], [0], [1], [0, 0, 1, 1], [], []>, precision = #tpu.contract_precision<fp32>} : vector<8x128xf32>, vector<128x128xf32>, vector<8x128xf32> -> vector<8x128xf32>
    %c0_12 = arith.constant 0 : index
    %c0_13 = arith.constant 0 : index
    %14 = vector.load %arg8[%c0_12, %c0_13] : memref<1x128xf32, #tpu.memory_space<vmem>>, vector<1x128xf32>
    %15 = vector.broadcast %14 : vector<1x128xf32> to vector<8x128xf32>
    %16 = arith.addf %13, %15 : vector<8x128xf32>
    %17 = vector.shape_cast %16 : vector<8x128xf32> to vector<8x1x128xf32>
    %18 = vector.shape_cast %17 : vector<8x1x128xf32> to vector<8x1x128xf32>
    %19 = vector.broadcast %18 : vector<8x1x128xf32> to vector<8x8x128xf32>
    %c0_14 = arith.constant 0 : index
    %c0_15 = arith.constant 0 : index
    %c0_16 = arith.constant 0 : index
    %20 = vector.load %arg1[%c0_14, %c0_15, %c0_16] : memref<8x8x128xf32, #tpu.memory_space<vmem>>, vector<8x8x128xf32>
    %21 = arith.mulf %20, %19 : vector<8x8x128xf32>
    %c0_17 = arith.constant 0 : index
    %c0_18 = arith.constant 0 : index
    %c0_19 = arith.constant 0 : index
    %22 = vector.load %arg9[%c0_17, %c0_18, %c0_19] : memref<8x8x128xf32, #tpu.memory_space<vmem>>, vector<8x8x128xf32>
    tpu.vector_store %arg9[%c0_17, %c0_18, %c0_19], %21 {strides = array<i32>} : memref<8x8x128xf32, #tpu.memory_space<vmem>>, vector<8x8x128xf32>,
    %c0_20 = arith.constant 0 : index
    %c0_21 = arith.constant 0 : index
    %c0_22 = arith.constant 0 : index
    %23 = vector.load %arg2[%c0_20, %c0_21, %c0_22] : memref<8x8x128xf32, #tpu.memory_space<vmem>>, vector<8x8x128xf32>
    %24 = arith.mulf %23, %19 : vector<8x8x128xf32>
    %c0_23 = arith.constant 0 : index
    %c0_24 = arith.constant 0 : index
    %c0_25 = arith.constant 0 : index
    %25 = vector.load %arg10[%c0_23, %c0_24, %c0_25] : memref<8x8x128xf32, #tpu.memory_space<vmem>>, vector<8x8x128xf32>
    tpu.vector_store %arg10[%c0_23, %c0_24, %c0_25], %24 {strides = array<i32>} : memref<8x8x128xf32, #tpu.memory_space<vmem>>, vector<8x8x128xf32>,
    return
  }
  func.func @transform_0(%arg0: i32) -> (i32, i32, i32) {
    %c0_i32 = arith.constant 0 : i32
    %c0_i32_0 = arith.constant 0 : i32
    %c0_i32_1 = arith.constant 0 : i32
    return %arg0, %c0_i32, %c0_i32_0 : i32, i32, i32
  }
  func.func @transform_1(%arg0: i32) -> (i32, i32, i32) {
    %c0_i32 = arith.constant 0 : i32
    %c0_i32_0 = arith.constant 0 : i32
    %c0_i32_1 = arith.constant 0 : i32
    return %arg0, %c0_i32, %c0_i32_0 : i32, i32, i32
  }
  func.func @transform_2(%arg0: i32) -> (i32, i32, i32) {
    %c0_i32 = arith.constant 0 : i32
    %c0_i32_0 = arith.constant 0 : i32
    %c0_i32_1 = arith.constant 0 : i32
    return %arg0, %c0_i32, %c0_i32_0 : i32, i32, i32
  }
  func.func @transform_3(%arg0: i32) -> (i32, i32, i32) {
    %c0_i32 = arith.constant 0 : i32
    %c0_i32_0 = arith.constant 0 : i32
    %c0_i32_1 = arith.constant 0 : i32
    return %arg0, %c0_i32, %c0_i32_0 : i32, i32, i32
  }
  func.func @transform_4(%arg0: i32) -> (i32, i32) {
    %c0_i32 = arith.constant 0 : i32
    %c0_i32_0 = arith.constant 0 : i32
    %c0_i32_1 = arith.constant 0 : i32
    return %c0_i32, %c0_i32_0 : i32, i32
  }
  func.func @transform_5(%arg0: i32) -> (i32, i32) {
    %c0_i32 = arith.constant 0 : i32
    %c0_i32_0 = arith.constant 0 : i32
    %c0_i32_1 = arith.constant 0 : i32
    return %c0_i32, %c0_i32_0 : i32, i32
  }
  func.func @transform_6(%arg0: i32) -> (i32, i32) {
    %c0_i32 = arith.constant 0 : i32
    %c0_i32_0 = arith.constant 0 : i32
    %c0_i32_1 = arith.constant 0 : i32
    return %c0_i32, %c0_i32_0 : i32, i32
  }
  func.func @transform_7(%arg0: i32) -> (i32, i32) {
    %c0_i32 = arith.constant 0 : i32
    %c0_i32_0 = arith.constant 0 : i32
    %c0_i32_1 = arith.constant 0 : i32
    return %c0_i32, %c0_i32_0 : i32, i32
  }
  func.func @transform_8(%arg0: i32) -> (i32, i32, i32) {
    %c0_i32 = arith.constant 0 : i32
    %c0_i32_0 = arith.constant 0 : i32
    %c0_i32_1 = arith.constant 0 : i32
    return %arg0, %c0_i32, %c0_i32_0 : i32, i32, i32
  }
  func.func @transform_9(%arg0: i32) -> (i32, i32, i32) {
    %c0_i32 = arith.constant 0 : i32
    %c0_i32_0 = arith.constant 0 : i32
    %c0_i32_1 = arith.constant 0 : i32
    return %arg0, %c0_i32, %c0_i32_0 : i32, i32, i32
  }
}

</mosaic_0001>

<llo_original>
// kernel: tpu_custom_call.1
$region0: #{tpu_custom_call.1}
  #allocation0 [shape = 'u32[]', space=smem, size = 0x4, offset = 0x4, fixed_abs, tag = 'smem constant byte address 0x4 - core index']
  #allocation1 [shape = 'u32[72,128]{1,0:T(1,128)}', space=vmem, size = 0x9000, scoped, tag = 'internal scratch']
  %s0 = inlined_call_operand.hbm [shape: f32[32,8,128], index: 0, kind: input, shape index: {}]
  %s1 = inlined_call_operand.hbm [shape: f32[32,8,128], index: 1, kind: input, shape index: {}]
  %s2 = inlined_call_operand.hbm [shape: f32[32,8,128], index: 2, kind: input, shape index: {}]
  %s3 = inlined_call_operand.hbm [shape: f32[32,8,128], index: 3, kind: input, shape index: {}]
  %s4 = inlined_call_operand.hbm [shape: f32[8,128], index: 4, kind: input, shape index: {}]
  %s5 = inlined_call_operand.hbm [shape: f32[8,128], index: 5, kind: input, shape index: {}]
  %s6 = inlined_call_operand.hbm [shape: f32[128,128], index: 6, kind: input, shape index: {}]
  %s7 = inlined_call_operand.vmem [shape: f32[1,128], index: 7, kind: input, shape index: {}]
  %s8 = inlined_call_operand.hbm [shape: f32[32,8,128], index: 8, kind: output, shape index: {0}]
  %s9 = inlined_call_operand.hbm [shape: f32[32,8,128], index: 9, kind: output, shape index: {1}]
  %10 = xla_tuple %s8, %s9
  %s11 = sld [smem:[#allocation0]]
  $region101: #{tpu_custom_call.1} parent=0
    _
  %s13 = ssub.s32 1, %s11
  %s14 = scalar_select 0, %s13, %s11
  $region1: #{tpu_custom_call.1} parent=0
    #allocation2 [shape = 'u8[65536]{0}', space=vmem, size = 0x10000, scoped, tag = 'input window, operand 0']
    #allocation3 [shape = 's32[2]{0}', space=sflag, size = 0x8, scoped, tag = 'scoped memory for tpu_custom_call.1']
    #allocation4 [shape = 's32[2]{0}', space=sflag, size = 0x8, scoped, tag = 'scoped memory for tpu_custom_call.1']
    #allocation5 [shape = 'u8[65536]{0}', space=vmem, size = 0x10000, scoped, tag = 'input window, operand 1']
    #allocation6 [shape = 's32[2]{0}', space=sflag, size = 0x8, scoped, tag = 'scoped memory for tpu_custom_call.1']
    #allocation7 [shape = 'u8[65536]{0}', space=vmem, size = 0x10000, scoped, tag = 'input window, operand 2']
    #allocation8 [shape = 'u8[65536]{0}', space=vmem, size = 0x10000, scoped, tag = 'input window, operand 3']
    #allocation9 [shape = 's32[2]{0}', space=sflag, size = 0x8, scoped, tag = 'scoped memory for tpu_custom_call.1']
    #allocation10 [shape = 'u8[4096]{0}', space=vmem, size = 0x1000, scoped, tag = 'input window, operand 4, single buffered']
    #allocation11 [shape = 'u8[4096]{0}', space=vmem, size = 0x1000, scoped, tag = 'input window, operand 5, single buffered']
    #allocation12 [shape = 's32[1]{0}', space=sflag, size = 0x4, scoped, tag = 'scoped memory for tpu_custom_call.1']
    #allocation13 [shape = 'u8[65536]{0}', space=vmem, size = 0x10000, scoped, tag = 'input window, operand 6, single buffered']
    #allocation14 [shape = 'u8[65536]{0}', space=vmem, size = 0x10000, scoped, tag = 'output window, operand 0']
    #allocation15 [shape = 'u8[65536]{0}', space=vmem, size = 0x10000, scoped, tag = 'output window, operand 1']
    #allocation16 [shape = 's32[2]{0}', space=sflag, size = 0x8, scoped, tag = 'scoped memory for tpu_custom_call.1']
    %15 = vsyncpa [#allocation3], 0
    %s16 = scalar_lea.sflag [#allocation3], 1
    %17 = vsyncpa %s16, 0
    %18 = vsyncpa [#allocation6], 0
    %s19 = scalar_lea.sflag [#allocation6], 1
    %20 = vsyncpa %s19, 0
    %21 = vsyncpa [#allocation9], 0
    %s22 = scalar_lea.sflag [#allocation9], 1
    %23 = vsyncpa %s22, 0
    %24 = vsyncpa [#allocation12], 0
    %25 = vsyncpa [#allocation4], 0
    %s26 = scalar_lea.sflag [#allocation4], 1
    %27 = vsyncpa %s26, 0
    %28 = vsyncpa [#allocation16], 0
    %s29 = scalar_lea.sflag [#allocation16], 1
    %30 = vsyncpa %s29, 0
    loop: start=0, step=1, limit=6
    $region2: #{tpu_custom_call.1} parent=1 // loop_pre_header
      _
    $region3: #{tpu_custom_call.1} parent=1 // loop_header
      %s32 = sphi 0, %s36
      %p33 = scmp.ge.s32.totalorder %s32, 6
      %s42 = sphi 0, %s44
      %s45 = sphi 0, %s42
      %s46 = sphi 0, %s45
      %s62 = sphi 0, %s46
      %s68 = sphi 0, %s70
      %s71 = sphi 0, %s68
      %s72 = sphi 0, %s71
      %s88 = sphi 0, %s72
      %s94 = sphi 0, %s96
      %s97 = sphi 0, %s94
      %s98 = sphi 0, %s97
      %s114 = sphi 0, %s98
      %s120 = sphi 0, %s122
      %s123 = sphi 0, %s120
      %s124 = sphi 0, %s123
      %s140 = sphi 0, %s124
      %s144 = sphi 0, %s144
      %s146 = sphi 0, %s144
      %s147 = sphi 0, %s146
      %s161 = sphi 0, %s147
      %s165 = sphi 0, %s165
      %s167 = sphi 0, %s165
      %s168 = sphi 0, %s167
      %s182 = sphi 0, %s168
      %s186 = sphi 0, %s186
      %s188 = sphi 0, %s186
      %s189 = sphi 0, %s188
      %s203 = sphi 0, %s189
      %s207 = sphi 0, %s207
      %s209 = sphi 0, %s207
      %s210 = sphi 0, %s209
      %s224 = sphi 0, %s210
      %s230 = sphi 0, %s232
      %s233 = sphi 0, %s230
      %s234 = sphi 0, %s233
      %s250 = sphi 0, %s234
      %s256 = sphi 0, %s258
      %s259 = sphi 0, %s256
      %s260 = sphi 0, %s259
      %s276 = sphi 0, %s260
    $region4: #{tpu_custom_call.1} parent=1 // loop_header_branch
      %35 = sbr.rel (%p33) target = $region8
    $region5: #{tpu_custom_call.1} parent=1 // loop_body
      %s37 = ssub.s32 %s32, 1
      %s38 = ssub.s32 %s32, 2
      %s39 = sadd.s32 %s32, 1
      %s40 = ssub.s32 %s32, %s39
      %p41 = scmp.eq.s32.totalorder %s40, 0
      %s43 = sadd.s32 %s42, 1
      %s44 = scalar_select %p41, %s42, %s43
      %p47 = pneg %p41
      %p48 = scmp.eq.s32.totalorder %s32, 3
      %p49 = por %p47, %p48
      %p50 = scmp.ne.s32.totalorder %s42, %s45
      %p51 = scmp.eq.s32.totalorder %s32, 0
      %p52 = por %p50, %p51
      %p53 = scmp.ne.s32.totalorder %s42, %s45
      %p54 = scmp.eq.s32.totalorder %s37, 3
      %p55 = por %p53, %p54
      %p56 = scmp.ne.s32.totalorder %s45, %s46
      %p57 = scmp.eq.s32.totalorder %s37, 0
      %p58 = por %p56, %p57
      %p59 = scmp.ne.s32.totalorder %s45, %s46
      %p60 = scmp.eq.s32.totalorder %s38, 3
      %p61 = por %p59, %p60
      %p63 = scmp.ne.s32.totalorder %s46, %s62
      %p64 = scmp.eq.s32.totalorder %s38, 0
      %p65 = por %p63, %p64
      %s66 = ssub.s32 %s32, %s39
      %p67 = scmp.eq.s32.totalorder %s66, 0
      %s69 = sadd.s32 %s68, 1
      %s70 = scalar_select %p67, %s68, %s69
      %p73 = pneg %p67
      %p74 = scmp.eq.s32.totalorder %s32, 3
      %p75 = por %p73, %p74
      %p76 = scmp.ne.s32.totalorder %s68, %s71
      %p77 = scmp.eq.s32.totalorder %s32, 0
      %p78 = por %p76, %p77
      %p79 = scmp.ne.s32.totalorder %s68, %s71
      %p80 = scmp.eq.s32.totalorder %s37, 3
      %p81 = por %p79, %p80
      %p82 = scmp.ne.s32.totalorder %s71, %s72
      %p83 = scmp.eq.s32.totalorder %s37, 0
      %p84 = por %p82, %p83
      %p85 = scmp.ne.s32.totalorder %s71, %s72
      %p86 = scmp.eq.s32.totalorder %s38, 3
      %p87 = por %p85, %p86
      %p89 = scmp.ne.s32.totalorder %s72, %s88
      %p90 = scmp.eq.s32.totalorder %s38, 0
      %p91 = por %p89, %p90
      %s92 = ssub.s32 %s32, %s39
      %p93 = scmp.eq.s32.totalorder %s92, 0
      %s95 = sadd.s32 %s94, 1
      %s96 = scalar_select %p93, %s94, %s95
      %p99 = pneg %p93
      %p100 = scmp.eq.s32.totalorder %s32, 3
      %p101 = por %p99, %p100
      %p102 = scmp.ne.s32.totalorder %s94, %s97
      %p103 = scmp.eq.s32.totalorder %s32, 0
      %p104 = por %p102, %p103
      %p105 = scmp.ne.s32.totalorder %s94, %s97
      %p106 = scmp.eq.s32.totalorder %s37, 3
      %p107 = por %p105, %p106
      %p108 = scmp.ne.s32.totalorder %s97, %s98
      %p109 = scmp.eq.s32.totalorder %s37, 0
      %p110 = por %p108, %p109
      %p111 = scmp.ne.s32.totalorder %s97, %s98
      %p112 = scmp.eq.s32.totalorder %s38, 3
      %p113 = por %p111, %p112
      %p115 = scmp.ne.s32.totalorder %s98, %s114
      %p116 = scmp.eq.s32.totalorder %s38, 0
      %p117 = por %p115, %p116
      %s118 = ssub.s32 %s32, %s39
      %p119 = scmp.eq.s32.totalorder %s118, 0
      %s121 = sadd.s32 %s120, 1
      %s122 = scalar_select %p119, %s120, %s121
      %p125 = pneg %p119
      %p126 = scmp.eq.s32.totalorder %s32, 3
      %p127 = por %p125, %p126
      %p128 = scmp.ne.s32.totalorder %s120, %s123
      %p129 = scmp.eq.s32.totalorder %s32, 0
      %p130 = por %p128, %p129
      %p131 = scmp.ne.s32.totalorder %s120, %s123
      %p132 = scmp.eq.s32.totalorder %s37, 3
      %p133 = por %p131, %p132
      %p134 = scmp.ne.s32.totalorder %s123, %s124
      %p135 = scmp.eq.s32.totalorder %s37, 0
      %p136 = por %p134, %p135
      %p137 = scmp.ne.s32.totalorder %s123, %s124
      %p138 = scmp.eq.s32.totalorder %s38, 3
      %p139 = por %p137, %p138
      %p141 = scmp.ne.s32.totalorder %s124, %s140
      %p142 = scmp.eq.s32.totalorder %s38, 0
      %p143 = por %p141, %p142
      %s145 = sadd.s32 %s144, 1
      %p148 = scmp.eq.s32.totalorder %s32, 3
      %p149 = scmp.ne.s32.totalorder %s144, %s146
      %p150 = scmp.eq.s32.totalorder %s32, 0
      %p151 = por %p149, %p150
      %p152 = scmp.ne.s32.totalorder %s144, %s146
      %p153 = scmp.eq.s32.totalorder %s37, 3
      %p154 = por %p152, %p153
      %p155 = scmp.ne.s32.totalorder %s146, %s147
      %p156 = scmp.eq.s32.totalorder %s37, 0
      %p157 = por %p155, %p156
      %p158 = scmp.ne.s32.totalorder %s146, %s147
      %p159 = scmp.eq.s32.totalorder %s38, 3
      %p160 = por %p158, %p159
      %p162 = scmp.ne.s32.totalorder %s147, %s161
      %p163 = scmp.eq.s32.totalorder %s38, 0
      %p164 = por %p162, %p163
      %s166 = sadd.s32 %s165, 1
      %p169 = scmp.eq.s32.totalorder %s32, 3
      %p170 = scmp.ne.s32.totalorder %s165, %s167
      %p171 = scmp.eq.s32.totalorder %s32, 0
      %p172 = por %p170, %p171
      %p173 = scmp.ne.s32.totalorder %s165, %s167
      %p174 = scmp.eq.s32.totalorder %s37, 3
      %p175 = por %p173, %p174
      %p176 = scmp.ne.s32.totalorder %s167, %s168
      %p177 = scmp.eq.s32.totalorder %s37, 0
      %p178 = por %p176, %p177
      %p179 = scmp.ne.s32.totalorder %s167, %s168
      %p180 = scmp.eq.s32.totalorder %s38, 3
      %p181 = por %p179, %p180
      %p183 = scmp.ne.s32.totalorder %s168, %s182
      %p184 = scmp.eq.s32.totalorder %s38, 0
      %p185 = por %p183, %p184
      %s187 = sadd.s32 %s186, 1
      %p190 = scmp.eq.s32.totalorder %s32, 3
      %p191 = scmp.ne.s32.totalorder %s186, %s188
      %p192 = scmp.eq.s32.totalorder %s32, 0
      %p193 = por %p191, %p192
      %p194 = scmp.ne.s32.totalorder %s186, %s188
      %p195 = scmp.eq.s32.totalorder %s37, 3
      %p196 = por %p194, %p195
      %p197 = scmp.ne.s32.totalorder %s188, %s189
      %p198 = scmp.eq.s32.totalorder %s37, 0
      %p199 = por %p197, %p198
      %p200 = scmp.ne.s32.totalorder %s188, %s189
      %p201 = scmp.eq.s32.totalorder %s38, 3
      %p202 = por %p200, %p201
      %p204 = scmp.ne.s32.totalorder %s189, %s203
      %p205 = scmp.eq.s32.totalorder %s38, 0
      %p206 = por %p204, %p205
      %s208 = sadd.s32 %s207, 1
      %p211 = scmp.eq.s32.totalorder %s32, 3
      %p212 = scmp.ne.s32.totalorder %s207, %s209
      %p213 = scmp.eq.s32.totalorder %s32, 0
      %p214 = por %p212, %p213
      %p215 = scmp.ne.s32.totalorder %s207, %s209
      %p216 = scmp.eq.s32.totalorder %s37, 3
      %p217 = por %p215, %p216
      %p218 = scmp.ne.s32.totalorder %s209, %s210
      %p219 = scmp.eq.s32.totalorder %s37, 0
      %p220 = por %p218, %p219
      %p221 = scmp.ne.s32.totalorder %s209, %s210
      %p222 = scmp.eq.s32.totalorder %s38, 3
      %p223 = por %p221, %p222
      %p225 = scmp.ne.s32.totalorder %s210, %s224
      %p226 = scmp.eq.s32.totalorder %s38, 0
      %p227 = por %p225, %p226
      %s228 = ssub.s32 %s32, %s39
      %p229 = scmp.eq.s32.totalorder %s228, 0
      %s231 = sadd.s32 %s230, 1
      %s232 = scalar_select %p229, %s230, %s231
      %p235 = pneg %p229
      %p236 = scmp.eq.s32.totalorder %s32, 3
      %p237 = por %p235, %p236
      %p238 = scmp.ne.s32.totalorder %s230, %s233
      %p239 = scmp.eq.s32.totalorder %s32, 0
      %p240 = por %p238, %p239
      %p241 = scmp.ne.s32.totalorder %s230, %s233
      %p242 = scmp.eq.s32.totalorder %s37, 3
      %p243 = por %p241, %p242
      %p244 = scmp.ne.s32.totalorder %s233, %s234
      %p245 = scmp.eq.s32.totalorder %s37, 0
      %p246 = por %p244, %p245
      %p247 = scmp.ne.s32.totalorder %s233, %s234
      %p248 = scmp.eq.s32.totalorder %s38, 3
      %p249 = por %p247, %p248
      %p251 = scmp.ne.s32.totalorder %s234, %s250
      %p252 = scmp.eq.s32.totalorder %s38, 0
      %p253 = por %p251, %p252
      %s254 = ssub.s32 %s32, %s39
      %p255 = scmp.eq.s32.totalorder %s254, 0
      %s257 = sadd.s32 %s256, 1
      %s258 = scalar_select %p255, %s256, %s257
      %p261 = pneg %p255
      %p262 = scmp.eq.s32.totalorder %s32, 3
      %p263 = por %p261, %p262
      %p264 = scmp.ne.s32.totalorder %s256, %s259
      %p265 = scmp.eq.s32.totalorder %s32, 0
      %p266 = por %p264, %p265
      %p267 = scmp.ne.s32.totalorder %s256, %s259
      %p268 = scmp.eq.s32.totalorder %s37, 3
      %p269 = por %p267, %p268
      %p270 = scmp.ne.s32.totalorder %s259, %s260
      %p271 = scmp.eq.s32.totalorder %s37, 0
      %p272 = por %p270, %p271
      %p273 = scmp.ne.s32.totalorder %s259, %s260
      %p274 = scmp.eq.s32.totalorder %s38, 3
      %p275 = por %p273, %p274
      %p277 = scmp.ne.s32.totalorder %s260, %s276
      %p278 = scmp.eq.s32.totalorder %s38, 0
      %p279 = por %p277, %p278
      %p280 = scmp.le.s32.totalorder 1, %s32
      %p281 = scmp.lt.s32.totalorder %s32, 5
      %p282 = pnand %p280, %p281
      %p283 = pneg %p282
      // Predicated region
      $region9: #{tpu_custom_call.1} parent=5 // pred_check
        _
      $region10: #{tpu_custom_call.1} parent=5 // pred_check_branch
        %285 = sbr.rel (%p282) target = $region12
      $region11: #{tpu_custom_call.1} parent=5 // pred_region
        %s286 = ssub.s32 %s32, 1
        // Predicated region
        $region13: #{tpu_custom_call.1} parent=11 // pred_check
          %p287 = pneg %p157
        $region14: #{tpu_custom_call.1} parent=11 // pred_check_branch
          %289 = sbr.rel (%p287) target = $region16
        $region15: #{tpu_custom_call.1} parent=11 // pred_region
          %291 = vsyncadd [#allocation9], 0
          %s293 = sshll.u32 %s4, 4
          %s294 = int_to_ptr.hbm [resolvable:$true] %s293
          %s295 = sshll.u32 [#allocation10], 4
          %s296 = int_to_ptr.vmem [resolvable:$true] %s295
          %298 = dma.hbm_to_vmem [thread:$0]  %s294, 128, %s296, [#allocation9]
        $region16: #{tpu_custom_call.1} parent=11 // pred_fallthru
          _
        // Predicated region
        $region17: #{tpu_custom_call.1} parent=11 // pred_check
          %p299 = pneg %p178
        $region18: #{tpu_custom_call.1} parent=11 // pred_check_branch
          %301 = sbr.rel (%p299) target = $region20
        $region19: #{tpu_custom_call.1} parent=11 // pred_region
          %303 = vsyncadd [#allocation12], 0
          %s305 = sshll.u32 %s5, 4
          %s306 = int_to_ptr.hbm [resolvable:$true] %s305
          %s307 = sshll.u32 [#allocation11], 4
          %s308 = int_to_ptr.vmem [resolvable:$true] %s307
          %310 = dma.hbm_to_vmem [thread:$0]  %s306, 128, %s308, [#allocation12]
        $region20: #{tpu_custom_call.1} parent=11 // pred_fallthru
          _
        // Predicated region
        $region21: #{tpu_custom_call.1} parent=11 // pred_check
          %p311 = pneg %p199
        $region22: #{tpu_custom_call.1} parent=11 // pred_check_branch
          %313 = sbr.rel (%p311) target = $region24
        $region23: #{tpu_custom_call.1} parent=11 // pred_region
          %315 = vsyncadd [#allocation12], 0
          %s316 = sshll.u32 %s6, 4
          %s317 = int_to_ptr.hbm [resolvable:$true] %s316
          %s318 = sshll.u32 [#allocation13], 4
          %s319 = int_to_ptr.vmem [resolvable:$true] %s318
          %324 = dma.hbm_to_vmem [thread:$0]  %s317, 2048, %s319, [#allocation12], 128, 128, 8
        $region24: #{tpu_custom_call.1} parent=11 // pred_fallthru
          _
        // Predicated region
        $region25: #{tpu_custom_call.1} parent=11 // pred_check
          %p325 = pneg %p220
        $region26: #{tpu_custom_call.1} parent=11 // pred_check_branch
          %327 = sbr.rel (%p325) target = $region28
        $region27: #{tpu_custom_call.1} parent=11 // pred_region
          _
        $region28: #{tpu_custom_call.1} parent=11 // pred_fallthru
          _
      $region12: #{tpu_custom_call.1} parent=5 // pred_fallthru
        _
      %p328 = scmp.lt.s32.totalorder %s32, 4
      // Predicated region
      $region29: #{tpu_custom_call.1} parent=5 // pred_check
        %p329 = pneg %p328
      $region30: #{tpu_custom_call.1} parent=5 // pred_check_branch
        %331 = sbr.rel (%p329) target = $region32
      $region31: #{tpu_custom_call.1} parent=5 // pred_region
        // Predicated region
        $region33: #{tpu_custom_call.1} parent=31 // pred_check
          %p332 = pneg %p52
        $region34: #{tpu_custom_call.1} parent=31 // pred_check_branch
          %334 = sbr.rel (%p332) target = $region36
        $region35: #{tpu_custom_call.1} parent=31 // pred_region
          %s335 = sand.u32 %s42, 1
          %s336 = scalar_lea.sflag [#allocation3], %s335
          %s337 = sand.u32 %s42, 1
          %s338 = smul.addr %s337, 64
          %s339 = scalar_lea.vmem [#allocation2], %s338
          %s340 = smul.u32 8, %s32
          %342 = vsyncadd %s336, 0
          %s343 = smul.addr %s340, 8
          %s344 = scalar_lea.hbm %s0, %s343
          %s345 = sshll.u32 %s344, 4
          %s346 = int_to_ptr.hbm [resolvable:$true] %s345
          %s347 = sshll.u32 %s339, 4
          %s348 = int_to_ptr.vmem [resolvable:$true] %s347
          %353 = dma.hbm_to_vmem [thread:$0]  %s346, 1024, %s348, %s336, 128, 128, 8
        $region36: #{tpu_custom_call.1} parent=31 // pred_fallthru
          _
        // Predicated region
        $region37: #{tpu_custom_call.1} parent=31 // pred_check
          %p354 = pneg %p78
        $region38: #{tpu_custom_call.1} parent=31 // pred_check_branch
          %356 = sbr.rel (%p354) target = $region40
        $region39: #{tpu_custom_call.1} parent=31 // pred_region
          %s357 = sand.u32 %s32, 1
          %s358 = scalar_lea.sflag [#allocation6], %s357
          %s359 = sand.u32 %s68, 1
          %s360 = smul.addr %s359, 64
          %s361 = scalar_lea.vmem [#allocation5], %s360
          %s362 = smul.u32 8, %s32
          %364 = vsyncadd %s358, 0
          %s365 = smul.addr %s362, 8
          %s366 = scalar_lea.hbm %s1, %s365
          %s367 = sshll.u32 %s366, 4
          %s368 = int_to_ptr.hbm [resolvable:$true] %s367
          %s369 = sshll.u32 %s361, 4
          %s370 = int_to_ptr.vmem [resolvable:$true] %s369
          %375 = dma.hbm_to_vmem [thread:$0]  %s368, 1024, %s370, %s358, 128, 128, 8
        $region40: #{tpu_custom_call.1} parent=31 // pred_fallthru
          _
        // Predicated region
        $region41: #{tpu_custom_call.1} parent=31 // pred_check
          %p376 = pneg %p104
        $region42: #{tpu_custom_call.1} parent=31 // pred_check_branch
          %378 = sbr.rel (%p376) target = $region44
        $region43: #{tpu_custom_call.1} parent=31 // pred_region
          %s379 = sand.u32 %s32, 1
          %s380 = scalar_lea.sflag [#allocation6], %s379
          %s381 = sand.u32 %s94, 1
          %s382 = smul.addr %s381, 64
          %s383 = scalar_lea.vmem [#allocation7], %s382
          %s384 = smul.u32 8, %s32
          %386 = vsyncadd %s380, 0
          %s387 = smul.addr %s384, 8
          %s388 = scalar_lea.hbm %s2, %s387
          %s389 = sshll.u32 %s388, 4
          %s390 = int_to_ptr.hbm [resolvable:$true] %s389
          %s391 = sshll.u32 %s383, 4
          %s392 = int_to_ptr.vmem [resolvable:$true] %s391
          %397 = dma.hbm_to_vmem [thread:$0]  %s390, 1024, %s392, %s380, 128, 128, 8
        $region44: #{tpu_custom_call.1} parent=31 // pred_fallthru
          _
        // Predicated region
        $region45: #{tpu_custom_call.1} parent=31 // pred_check
          %p398 = pneg %p130
        $region46: #{tpu_custom_call.1} parent=31 // pred_check_branch
          %400 = sbr.rel (%p398) target = $region48
        $region47: #{tpu_custom_call.1} parent=31 // pred_region
          %s401 = sand.u32 %s32, 1
          %s402 = scalar_lea.sflag [#allocation9], %s401
          %s403 = sand.u32 %s120, 1
          %s404 = smul.addr %s403, 64
          %s405 = scalar_lea.vmem [#allocation8], %s404
          %s406 = smul.u32 8, %s32
          %408 = vsyncadd %s402, 0
          %s409 = smul.addr %s406, 8
          %s410 = scalar_lea.hbm %s3, %s409
          %s411 = sshll.u32 %s410, 4
          %s412 = int_to_ptr.hbm [resolvable:$true] %s411
          %s413 = sshll.u32 %s405, 4
          %s414 = int_to_ptr.vmem [resolvable:$true] %s413
          %419 = dma.hbm_to_vmem [thread:$0]  %s412, 1024, %s414, %s402, 128, 128, 8
        $region48: #{tpu_custom_call.1} parent=31 // pred_fallthru
          _
      $region32: #{tpu_custom_call.1} parent=5 // pred_fallthru
        _
      %p420 = scmp.le.s32.totalorder 1, %s32
      %p421 = scmp.lt.s32.totalorder %s32, 5
      %p422 = pnand %p420, %p421
      %p423 = pneg %p422
      // Predicated region
      $region49: #{tpu_custom_call.1} parent=5 // pred_check
        _
      $region50: #{tpu_custom_call.1} parent=5 // pred_check_branch
        %425 = sbr.rel (%p422) target = $region52
      $region51: #{tpu_custom_call.1} parent=5 // pred_region
        %s426 = ssub.s32 %s32, 1
        %s427 = sand.u32 %s45, 1
        %s428 = scalar_lea.sflag [#allocation3], %s427
        %s429 = sand.u32 %s45, 1
        %s430 = smul.addr %s429, 64
        %s431 = scalar_lea.vmem [#allocation2], %s430
        // Predicated region
        $region53: #{tpu_custom_call.1} parent=51 // pred_check
          %p432 = pneg %p58
        $region54: #{tpu_custom_call.1} parent=51 // pred_check_branch
          %434 = sbr.rel (%p432) target = $region56
        $region55: #{tpu_custom_call.1} parent=51 // pred_region
          %436 = dma.done %s428, 1024
        $region56: #{tpu_custom_call.1} parent=51 // pred_fallthru
          _
        %s437 = sand.u32 %s37, 1
        %s438 = scalar_lea.sflag [#allocation6], %s437
        %s439 = sand.u32 %s71, 1
        %s440 = smul.addr %s439, 64
        %s441 = scalar_lea.vmem [#allocation5], %s440
        // Predicated region
        $region57: #{tpu_custom_call.1} parent=51 // pred_check
          %p442 = pneg %p84
        $region58: #{tpu_custom_call.1} parent=51 // pred_check_branch
          %444 = sbr.rel (%p442) target = $region60
        $region59: #{tpu_custom_call.1} parent=51 // pred_region
          %446 = dma.done %s438, 1024
        $region60: #{tpu_custom_call.1} parent=51 // pred_fallthru
          _
        %s447 = sand.u32 %s37, 1
        %s448 = scalar_lea.sflag [#allocation6], %s447
        %s449 = sand.u32 %s97, 1
        %s450 = smul.addr %s449, 64
        %s451 = scalar_lea.vmem [#allocation7], %s450
        // Predicated region
        $region61: #{tpu_custom_call.1} parent=51 // pred_check
          %p452 = pneg %p110
        $region62: #{tpu_custom_call.1} parent=51 // pred_check_branch
          %454 = sbr.rel (%p452) target = $region64
        $region63: #{tpu_custom_call.1} parent=51 // pred_region
          %456 = dma.done %s448, 1024
        $region64: #{tpu_custom_call.1} parent=51 // pred_fallthru
          _
        %s457 = sand.u32 %s37, 1
        %s458 = scalar_lea.sflag [#allocation9], %s457
        %s459 = sand.u32 %s123, 1
        %s460 = smul.addr %s459, 64
        %s461 = scalar_lea.vmem [#allocation8], %s460
        // Predicated region
        $region65: #{tpu_custom_call.1} parent=51 // pred_check
          %p462 = pneg %p136
        $region66: #{tpu_custom_call.1} parent=51 // pred_check_branch
          %464 = sbr.rel (%p462) target = $region68
        $region67: #{tpu_custom_call.1} parent=51 // pred_region
          %466 = dma.done %s458, 1024
        $region68: #{tpu_custom_call.1} parent=51 // pred_fallthru
          _
        // Predicated region
        $region69: #{tpu_custom_call.1} parent=51 // pred_check
          %p467 = pneg %p157
        $region70: #{tpu_custom_call.1} parent=51 // pred_check_branch
          %469 = sbr.rel (%p467) target = $region72
        $region71: #{tpu_custom_call.1} parent=51 // pred_region
          %471 = dma.done [#allocation9], 128
        $region72: #{tpu_custom_call.1} parent=51 // pred_fallthru
          _
        // Predicated region
        $region73: #{tpu_custom_call.1} parent=51 // pred_check
          %p472 = pneg %p178
        $region74: #{tpu_custom_call.1} parent=51 // pred_check_branch
          %474 = sbr.rel (%p472) target = $region76
        $region75: #{tpu_custom_call.1} parent=51 // pred_region
          %476 = dma.done [#allocation12], 128
        $region76: #{tpu_custom_call.1} parent=51 // pred_fallthru
          _
        // Predicated region
        $region77: #{tpu_custom_call.1} parent=51 // pred_check
          %p477 = pneg %p199
        $region78: #{tpu_custom_call.1} parent=51 // pred_check_branch
          %479 = sbr.rel (%p477) target = $region80
        $region79: #{tpu_custom_call.1} parent=51 // pred_region
          %481 = dma.done [#allocation12], 2048
        $region80: #{tpu_custom_call.1} parent=51 // pred_fallthru
          _
        %s482 = sand.u32 %s45, 1
        %s483 = scalar_lea.sflag [#allocation3], %s482
        %s484 = sand.u32 %s45, 1
        %s485 = smul.addr %s484, 64
        %s486 = scalar_lea.vmem [#allocation2], %s485
        %p487 = pneg %p58
        %p488 = pneg %p55
        %s489 = sand.u32 %s37, 1
        %s490 = scalar_lea.sflag [#allocation6], %s489
        %s491 = sand.u32 %s71, 1
        %s492 = smul.addr %s491, 64
        %s493 = scalar_lea.vmem [#allocation5], %s492
        %p494 = pneg %p84
        %p495 = pneg %p81
        %s496 = sand.u32 %s37, 1
        %s497 = scalar_lea.sflag [#allocation6], %s496
        %s498 = sand.u32 %s97, 1
        %s499 = smul.addr %s498, 64
        %s500 = scalar_lea.vmem [#allocation7], %s499
        %p501 = pneg %p110
        %p502 = pneg %p107
        %s503 = sand.u32 %s37, 1
        %s504 = scalar_lea.sflag [#allocation9], %s503
        %s505 = sand.u32 %s123, 1
        %s506 = smul.addr %s505, 64
        %s507 = scalar_lea.vmem [#allocation8], %s506
        %p508 = pneg %p136
        %p509 = pneg %p133
        %p510 = pneg %p157
        %p511 = pneg %p154
        %p512 = pneg %p178
        %p513 = pneg %p175
        %p514 = pneg %p199
        %p515 = pneg %p196
        %p516 = pneg %p220
        %p517 = pneg %p217
        %p518 = pneg %p246
        %p519 = pneg %p243
        %s520 = sand.u32 %s233, 1
        %s521 = scalar_lea.sflag [#allocation4], %s520
        %s522 = sand.u32 %s233, 1
        %s523 = smul.addr %s522, 64
        %s524 = scalar_lea.vmem [#allocation14], %s523
        %p525 = pneg %p272
        %p526 = pneg %p269
        %s527 = sand.u32 %s259, 1
        %s528 = scalar_lea.sflag [#allocation16], %s527
        %s529 = sand.u32 %s259, 1
        %s530 = smul.addr %s529, 64
        %s531 = scalar_lea.vmem [#allocation15], %s530
        %s532 = smul.u32 8, %s37
        %s533 = smul.u32 8, %s37
        %s534 = smul.u32 8, %s37
        %s535 = smul.u32 8, %s37
        %s536 = smul.u32 8, %s37
        %s537 = smul.u32 8, %s37
        %v538 = vld [vmem:[%s451] sm:$0xff]
        %v539 = vld [vmem:[%s451 + $0x8] sm:$0xff]
        %v540 = vld [vmem:[%s451 + $0x10] sm:$0xff]
        %v541 = vld [vmem:[%s451 + $0x18] sm:$0xff]
        %v542 = vld [vmem:[%s451 + $0x20] sm:$0xff]
        %v543 = vld [vmem:[%s451 + $0x28] sm:$0xff]
        %v544 = vld [vmem:[%s451 + $0x30] sm:$0xff]
        %v545 = vld [vmem:[%s451 + $0x38] sm:$0xff]
        %v546 = vld [vmem:[%s461] sm:$0xff]
        %v547 = vld [vmem:[%s461 + $0x8] sm:$0xff]
        %v548 = vld [vmem:[%s461 + $0x10] sm:$0xff]
        %v549 = vld [vmem:[%s461 + $0x18] sm:$0xff]
        %v550 = vld [vmem:[%s461 + $0x20] sm:$0xff]
        %v551 = vld [vmem:[%s461 + $0x28] sm:$0xff]
        %v552 = vld [vmem:[%s461 + $0x30] sm:$0xff]
        %v553 = vld [vmem:[%s461 + $0x38] sm:$0xff]
        %v554 = vld [vmem:[#allocation10] sm:$0xff]
        %v555 = vmul.f32 %v538, %v554
        %v556 = vmul.f32 %v539, %v554
        %v557 = vmul.f32 %v540, %v554
        %v558 = vmul.f32 %v541, %v554
        %v559 = vmul.f32 %v542, %v554
        %v560 = vmul.f32 %v543, %v554
        %v561 = vmul.f32 %v544, %v554
        %v562 = vmul.f32 %v545, %v554
        %v563 = vld [vmem:[#allocation11] sm:$0xff]
        %v564 = vmul.f32 %v546, %v563
        %v565 = vmul.f32 %v547, %v563
        %v566 = vmul.f32 %v548, %v563
        %v567 = vmul.f32 %v549, %v563
        %v568 = vmul.f32 %v550, %v563
        %v569 = vmul.f32 %v551, %v563
        %v570 = vmul.f32 %v552, %v563
        %v571 = vmul.f32 %v553, %v563
        %v572 = vsub.f32 %v555, %v564
        %v573 = vsub.f32 %v556, %v565
        %v574 = vsub.f32 %v557, %v566
        %v575 = vsub.f32 %v558, %v567
        %v576 = vsub.f32 %v559, %v568
        %v577 = vsub.f32 %v560, %v569
        %v578 = vsub.f32 %v561, %v570
        %v579 = vsub.f32 %v562, %v571
        %v580 = vrot.slane %v572, 4
        %v581 = vadd.f32 %v572, %v580
        %v582 = vrot.slane %v581, 2
        %v583 = vadd.f32 %v581, %v582
        %v584 = vrot.slane %v583, 1
        %v585 = vadd.f32 %v583, %v584
        %v586 = vrot.slane %v573, 4
        %v587 = vadd.f32 %v573, %v586
        %v588 = vrot.slane %v587, 2
        %v589 = vadd.f32 %v587, %v588
        %v590 = vrot.slane %v589, 1
        %v591 = vadd.f32 %v589, %v590
        %v592 = vrot.slane %v574, 4
        %v593 = vadd.f32 %v574, %v592
        %v594 = vrot.slane %v593, 2
        %v595 = vadd.f32 %v593, %v594
        %v596 = vrot.slane %v595, 1
        %v597 = vadd.f32 %v595, %v596
        %v598 = vrot.slane %v575, 4
        %v599 = vadd.f32 %v575, %v598
        %v600 = vrot.slane %v599, 2
        %v601 = vadd.f32 %v599, %v600
        %v602 = vrot.slane %v601, 1
        %v603 = vadd.f32 %v601, %v602
        %v604 = vrot.slane %v576, 4
        %v605 = vadd.f32 %v576, %v604
        %v606 = vrot.slane %v605, 2
        %v607 = vadd.f32 %v605, %v606
        %v608 = vrot.slane %v607, 1
        %v609 = vadd.f32 %v607, %v608
        %v610 = vrot.slane %v577, 4
        %v611 = vadd.f32 %v577, %v610
        %v612 = vrot.slane %v611, 2
        %v613 = vadd.f32 %v611, %v612
        %v614 = vrot.slane %v613, 1
        %v615 = vadd.f32 %v613, %v614
        %v616 = vrot.slane %v578, 4
        %v617 = vadd.f32 %v578, %v616
        %v618 = vrot.slane %v617, 2
        %v619 = vadd.f32 %v617, %v618
        %v620 = vrot.slane %v619, 1
        %v621 = vadd.f32 %v619, %v620
        %v622 = vrot.slane %v579, 4
        %v623 = vadd.f32 %v579, %v622
        %v624 = vrot.slane %v623, 2
        %v625 = vadd.f32 %v623, %v624
        %v626 = vrot.slane %v625, 1
        %v627 = vadd.f32 %v625, %v626
        %v628 = vld [vmem:[#allocation13] sm:$0xff]
        %v629 = vld [vmem:[#allocation13 + $0x8] sm:$0xff]
        %v630 = vld [vmem:[#allocation13 + $0x10] sm:$0xff]
        %v631 = vld [vmem:[#allocation13 + $0x18] sm:$0xff]
        %v632 = vld [vmem:[#allocation13 + $0x20] sm:$0xff]
        %v633 = vld [vmem:[#allocation13 + $0x28] sm:$0xff]
        %v634 = vld [vmem:[#allocation13 + $0x30] sm:$0xff]
        %v635 = vld [vmem:[#allocation13 + $0x38] sm:$0xff]
        %v636 = vld [vmem:[#allocation13 + $0x40] sm:$0xff]
        %v637 = vld [vmem:[#allocation13 + $0x48] sm:$0xff]
        %v638 = vld [vmem:[#allocation13 + $0x50] sm:$0xff]
        %v639 = vld [vmem:[#allocation13 + $0x58] sm:$0xff]
        %v640 = vld [vmem:[#allocation13 + $0x60] sm:$0xff]
        %v641 = vld [vmem:[#allocation13 + $0x68] sm:$0xff]
        %v642 = vld [vmem:[#allocation13 + $0x70] sm:$0xff]
        %v643 = vld [vmem:[#allocation13 + $0x78] sm:$0xff]
        %v644 = vld [vmem:[%s7] sm:$0x1]
        %v646 = vperm.slane %v644, 0
        %vm656 = vcmask 1041409
        %v657 = vsel %vm656, %v591, %v585
        %vm658 = vcmask 1042434
        %v659 = vsel %vm658, %v597, %v657
        %vm660 = vcmask 1043459
        %v661 = vsel %vm660, %v603, %v659
        %vm662 = vcmask 1044484
        %v663 = vsel %vm662, %v609, %v661
        %vm664 = vcmask 1045509
        %v665 = vsel %vm664, %v615, %v663
        %vm666 = vcmask 1046534
        %v667 = vsel %vm666, %v621, %v665
        %vm668 = vcmask 1047559
        %v669 = vsel %vm668, %v627, %v667
        %v671 = vand.u32 %v643, 4294901760
        %672 = vmatpush.msra.mxu0 %v671
        %v673 = vand.u32 %v642, 4294901760
        %674 = vmatpush.msra.mxu0 %v673
        %v675 = vand.u32 %v641, 4294901760
        %676 = vmatpush.msra.mxu0 %v675
        %v677 = vand.u32 %v640, 4294901760
        %678 = vmatpush.msra.mxu0 %v677
        %v679 = vand.u32 %v639, 4294901760
        %680 = vmatpush.msra.mxu0 %v679
        %v681 = vand.u32 %v638, 4294901760
        %682 = vmatpush.msra.mxu0 %v681
        %v683 = vand.u32 %v637, 4294901760
        %684 = vmatpush.msra.mxu0 %v683
        %v685 = vand.u32 %v636, 4294901760
        %686 = vmatpush.msra.mxu0 %v685
        %v687 = vand.u32 %v635, 4294901760
        %688 = vmatpush.msra.mxu0 %v687
        %v689 = vand.u32 %v634, 4294901760
        %690 = vmatpush.msra.mxu0 %v689
        %v691 = vand.u32 %v633, 4294901760
        %692 = vmatpush.msra.mxu0 %v691
        %v693 = vand.u32 %v632, 4294901760
        %694 = vmatpush.msra.mxu0 %v693
        %v695 = vand.u32 %v631, 4294901760
        %696 = vmatpush.msra.mxu0 %v695
        %v697 = vand.u32 %v630, 4294901760
        %698 = vmatpush.msra.mxu0 %v697
        %v699 = vand.u32 %v629, 4294901760
        %700 = vmatpush.msra.mxu0 %v699
        %v701 = vand.u32 %v628, 4294901760
        %702 = vmatpush.msra.mxu0 %v701
        %v703 = vand.u32 %v669, 4294901760
        %v704 = vsub.f32 %v669, %v703
        %v705 = vand.u32 %v704, 4294901760
        %v706 = vsub.f32 %v704, %v705
        %v707 = vand.u32 %v706, 4294901760
        %708 = vmatmul.f32.gmra.mxu0 %v707
        %v709 = vpop.f32.mrf.mxu0
        %v710 = vadd.f32 %v646, %v709
        %711 = vdwg.mxu0
        %v712 = vand.u32 %v643, 4294901760
        %v713 = vsub.f32 %v643, %v712
        %v714 = vand.u32 %v713, 4294901760
        %v715 = vsub.f32 %v713, %v714
        %v716 = vand.u32 %v715, 4294901760
        %717 = vmatpush.msra.mxu0 %v716
        %v718 = vand.u32 %v642, 4294901760
        %v719 = vsub.f32 %v642, %v718
        %v720 = vand.u32 %v719, 4294901760
        %v721 = vsub.f32 %v719, %v720
        %v722 = vand.u32 %v721, 4294901760
        %723 = vmatpush.msra.mxu0 %v722
        %v724 = vand.u32 %v641, 4294901760
        %v725 = vsub.f32 %v641, %v724
        %v726 = vand.u32 %v725, 4294901760
        %v727 = vsub.f32 %v725, %v726
        %v728 = vand.u32 %v727, 4294901760
        %729 = vmatpush.msra.mxu0 %v728
        %v730 = vand.u32 %v640, 4294901760
        %v731 = vsub.f32 %v640, %v730
        %v732 = vand.u32 %v731, 4294901760
        %v733 = vsub.f32 %v731, %v732
        %v734 = vand.u32 %v733, 4294901760
        %735 = vmatpush.msra.mxu0 %v734
        %v736 = vand.u32 %v639, 4294901760
        %v737 = vsub.f32 %v639, %v736
        %v738 = vand.u32 %v737, 4294901760
        %v739 = vsub.f32 %v737, %v738
        %v740 = vand.u32 %v739, 4294901760
        %741 = vmatpush.msra.mxu0 %v740
        %v742 = vand.u32 %v638, 4294901760
        %v743 = vsub.f32 %v638, %v742
        %v744 = vand.u32 %v743, 4294901760
        %v745 = vsub.f32 %v743, %v744
        %v746 = vand.u32 %v745, 4294901760
        %747 = vmatpush.msra.mxu0 %v746
        %v748 = vand.u32 %v637, 4294901760
        %v749 = vsub.f32 %v637, %v748
        %v750 = vand.u32 %v749, 4294901760
        %v751 = vsub.f32 %v749, %v750
        %v752 = vand.u32 %v751, 4294901760
        %753 = vmatpush.msra.mxu0 %v752
        %v754 = vand.u32 %v636, 4294901760
        %v755 = vsub.f32 %v636, %v754
        %v756 = vand.u32 %v755, 4294901760
        %v757 = vsub.f32 %v755, %v756
        %v758 = vand.u32 %v757, 4294901760
        %759 = vmatpush.msra.mxu0 %v758
        %v760 = vand.u32 %v635, 4294901760
        %v761 = vsub.f32 %v635, %v760
        %v762 = vand.u32 %v761, 4294901760
        %v763 = vsub.f32 %v761, %v762
        %v764 = vand.u32 %v763, 4294901760
        %765 = vmatpush.msra.mxu0 %v764
        %v766 = vand.u32 %v634, 4294901760
        %v767 = vsub.f32 %v634, %v766
        %v768 = vand.u32 %v767, 4294901760
        %v769 = vsub.f32 %v767, %v768
        %v770 = vand.u32 %v769, 4294901760
        %771 = vmatpush.msra.mxu0 %v770
        %v772 = vand.u32 %v633, 4294901760
        %v773 = vsub.f32 %v633, %v772
        %v774 = vand.u32 %v773, 4294901760
        %v775 = vsub.f32 %v773, %v774
        %v776 = vand.u32 %v775, 4294901760
        %777 = vmatpush.msra.mxu0 %v776
        %v778 = vand.u32 %v632, 4294901760
        %v779 = vsub.f32 %v632, %v778
        %v780 = vand.u32 %v779, 4294901760
        %v781 = vsub.f32 %v779, %v780
        %v782 = vand.u32 %v781, 4294901760
        %783 = vmatpush.msra.mxu0 %v782
        %v784 = vand.u32 %v631, 4294901760
        %v785 = vsub.f32 %v631, %v784
        %v786 = vand.u32 %v785, 4294901760
        %v787 = vsub.f32 %v785, %v786
        %v788 = vand.u32 %v787, 4294901760
        %789 = vmatpush.msra.mxu0 %v788
        %v790 = vand.u32 %v630, 4294901760
        %v791 = vsub.f32 %v630, %v790
        %v792 = vand.u32 %v791, 4294901760
        %v793 = vsub.f32 %v791, %v792
        %v794 = vand.u32 %v793, 4294901760
        %795 = vmatpush.msra.mxu0 %v794
        %v796 = vand.u32 %v629, 4294901760
        %v797 = vsub.f32 %v629, %v796
        %v798 = vand.u32 %v797, 4294901760
        %v799 = vsub.f32 %v797, %v798
        %v800 = vand.u32 %v799, 4294901760
        %801 = vmatpush.msra.mxu0 %v800
        %v802 = vand.u32 %v628, 4294901760
        %v803 = vsub.f32 %v628, %v802
        %v804 = vand.u32 %v803, 4294901760
        %v805 = vsub.f32 %v803, %v804
        %v806 = vand.u32 %v805, 4294901760
        %807 = vmatpush.msra.mxu0 %v806
        %v808 = vand.u32 %v669, 4294901760
        %809 = vmatmul.f32.gmra.mxu0 %v808
        %v810 = vpop.f32.mrf.mxu0
        %v811 = vadd.f32 %v710, %v810
        %812 = vdwg.mxu0
        %v813 = vand.u32 %v643, 4294901760
        %v814 = vsub.f32 %v643, %v813
        %815 = vmatpush.msra.mxu0 %v814
        %v816 = vand.u32 %v642, 4294901760
        %v817 = vsub.f32 %v642, %v816
        %818 = vmatpush.msra.mxu0 %v817
        %v819 = vand.u32 %v641, 4294901760
        %v820 = vsub.f32 %v641, %v819
        %821 = vmatpush.msra.mxu0 %v820
        %v822 = vand.u32 %v640, 4294901760
        %v823 = vsub.f32 %v640, %v822
        %824 = vmatpush.msra.mxu0 %v823
        %v825 = vand.u32 %v639, 4294901760
        %v826 = vsub.f32 %v639, %v825
        %827 = vmatpush.msra.mxu0 %v826
        %v828 = vand.u32 %v638, 4294901760
        %v829 = vsub.f32 %v638, %v828
        %830 = vmatpush.msra.mxu0 %v829
        %v831 = vand.u32 %v637, 4294901760
        %v832 = vsub.f32 %v637, %v831
        %833 = vmatpush.msra.mxu0 %v832
        %v834 = vand.u32 %v636, 4294901760
        %v835 = vsub.f32 %v636, %v834
        %836 = vmatpush.msra.mxu0 %v835
        %v837 = vand.u32 %v635, 4294901760
        %v838 = vsub.f32 %v635, %v837
        %839 = vmatpush.msra.mxu0 %v838
        %v840 = vand.u32 %v634, 4294901760
        %v841 = vsub.f32 %v634, %v840
        %842 = vmatpush.msra.mxu0 %v841
        %v843 = vand.u32 %v633, 4294901760
        %v844 = vsub.f32 %v633, %v843
        %845 = vmatpush.msra.mxu0 %v844
        %v846 = vand.u32 %v632, 4294901760
        %v847 = vsub.f32 %v632, %v846
        %848 = vmatpush.msra.mxu0 %v847
        %v849 = vand.u32 %v631, 4294901760
        %v850 = vsub.f32 %v631, %v849
        %851 = vmatpush.msra.mxu0 %v850
        %v852 = vand.u32 %v630, 4294901760
        %v853 = vsub.f32 %v630, %v852
        %854 = vmatpush.msra.mxu0 %v853
        %v855 = vand.u32 %v629, 4294901760
        %v856 = vsub.f32 %v629, %v855
        %857 = vmatpush.msra.mxu0 %v856
        %v858 = vand.u32 %v628, 4294901760
        %v859 = vsub.f32 %v628, %v858
        %860 = vmatpush.msra.mxu0 %v859
        %v861 = vand.u32 %v669, 4294901760
        %v862 = vsub.f32 %v669, %v861
        %863 = vmatmul.f32.gmra.mxu0 %v862
        %v864 = vpop.f32.mrf.mxu0
        %v865 = vadd.f32 %v811, %v864
        %866 = vdwg.mxu0
        %v867 = vand.u32 %v643, 4294901760
        %868 = vmatpush.msra.mxu0 %v867
        %v869 = vand.u32 %v642, 4294901760
        %870 = vmatpush.msra.mxu0 %v869
        %v871 = vand.u32 %v641, 4294901760
        %872 = vmatpush.msra.mxu0 %v871
        %v873 = vand.u32 %v640, 4294901760
        %874 = vmatpush.msra.mxu0 %v873
        %v875 = vand.u32 %v639, 4294901760
        %876 = vmatpush.msra.mxu0 %v875
        %v877 = vand.u32 %v638, 4294901760
        %878 = vmatpush.msra.mxu0 %v877
        %v879 = vand.u32 %v637, 4294901760
        %880 = vmatpush.msra.mxu0 %v879
        %v881 = vand.u32 %v636, 4294901760
        %882 = vmatpush.msra.mxu0 %v881
        %v883 = vand.u32 %v635, 4294901760
        %884 = vmatpush.msra.mxu0 %v883
        %v885 = vand.u32 %v634, 4294901760
        %886 = vmatpush.msra.mxu0 %v885
        %v887 = vand.u32 %v633, 4294901760
        %888 = vmatpush.msra.mxu0 %v887
        %v889 = vand.u32 %v632, 4294901760
        %890 = vmatpush.msra.mxu0 %v889
        %v891 = vand.u32 %v631, 4294901760
        %892 = vmatpush.msra.mxu0 %v891
        %v893 = vand.u32 %v630, 4294901760
        %894 = vmatpush.msra.mxu0 %v893
        %v895 = vand.u32 %v629, 4294901760
        %896 = vmatpush.msra.mxu0 %v895
        %v897 = vand.u32 %v628, 4294901760
        %898 = vmatpush.msra.mxu0 %v897
        %v899 = vand.u32 %v669, 4294901760
        %v900 = vsub.f32 %v669, %v899
        %v901 = vand.u32 %v900, 4294901760
        %902 = vmatmul.f32.gmra.mxu0 %v901
        %v903 = vpop.f32.mrf.mxu0
        %v904 = vadd.f32 %v865, %v903
        %905 = vdwg.mxu0
        %v906 = vand.u32 %v643, 4294901760
        %v907 = vsub.f32 %v643, %v906
        %v908 = vand.u32 %v907, 4294901760
        %909 = vmatpush.msra.mxu0 %v908
        %v910 = vand.u32 %v642, 4294901760
        %v911 = vsub.f32 %v642, %v910
        %v912 = vand.u32 %v911, 4294901760
        %913 = vmatpush.msra.mxu0 %v912
        %v914 = vand.u32 %v641, 4294901760
        %v915 = vsub.f32 %v641, %v914
        %v916 = vand.u32 %v915, 4294901760
        %917 = vmatpush.msra.mxu0 %v916
        %v918 = vand.u32 %v640, 4294901760
        %v919 = vsub.f32 %v640, %v918
        %v920 = vand.u32 %v919, 4294901760
        %921 = vmatpush.msra.mxu0 %v920
        %v922 = vand.u32 %v639, 4294901760
        %v923 = vsub.f32 %v639, %v922
        %v924 = vand.u32 %v923, 4294901760
        %925 = vmatpush.msra.mxu0 %v924
        %v926 = vand.u32 %v638, 4294901760
        %v927 = vsub.f32 %v638, %v926
        %v928 = vand.u32 %v927, 4294901760
        %929 = vmatpush.msra.mxu0 %v928
        %v930 = vand.u32 %v637, 4294901760
        %v931 = vsub.f32 %v637, %v930
        %v932 = vand.u32 %v931, 4294901760
        %933 = vmatpush.msra.mxu0 %v932
        %v934 = vand.u32 %v636, 4294901760
        %v935 = vsub.f32 %v636, %v934
        %v936 = vand.u32 %v935, 4294901760
        %937 = vmatpush.msra.mxu0 %v936
        %v938 = vand.u32 %v635, 4294901760
        %v939 = vsub.f32 %v635, %v938
        %v940 = vand.u32 %v939, 4294901760
        %941 = vmatpush.msra.mxu0 %v940
        %v942 = vand.u32 %v634, 4294901760
        %v943 = vsub.f32 %v634, %v942
        %v944 = vand.u32 %v943, 4294901760
        %945 = vmatpush.msra.mxu0 %v944
        %v946 = vand.u32 %v633, 4294901760
        %v947 = vsub.f32 %v633, %v946
        %v948 = vand.u32 %v947, 4294901760
        %949 = vmatpush.msra.mxu0 %v948
        %v950 = vand.u32 %v632, 4294901760
        %v951 = vsub.f32 %v632, %v950
        %v952 = vand.u32 %v951, 4294901760
        %953 = vmatpush.msra.mxu0 %v952
        %v954 = vand.u32 %v631, 4294901760
        %v955 = vsub.f32 %v631, %v954
        %v956 = vand.u32 %v955, 4294901760
        %957 = vmatpush.msra.mxu0 %v956
        %v958 = vand.u32 %v630, 4294901760
        %v959 = vsub.f32 %v630, %v958
        %v960 = vand.u32 %v959, 4294901760
        %961 = vmatpush.msra.mxu0 %v960
        %v962 = vand.u32 %v629, 4294901760
        %v963 = vsub.f32 %v629, %v962
        %v964 = vand.u32 %v963, 4294901760
        %965 = vmatpush.msra.mxu0 %v964
        %v966 = vand.u32 %v628, 4294901760
        %v967 = vsub.f32 %v628, %v966
        %v968 = vand.u32 %v967, 4294901760
        %969 = vmatpush.msra.mxu0 %v968
        %v970 = vand.u32 %v669, 4294901760
        %971 = vmatmul.f32.gmra.mxu0 %v970
        %v972 = vpop.f32.mrf.mxu0
        %v973 = vadd.f32 %v904, %v972
        %974 = vdwg.mxu0
        %v975 = vand.u32 %v643, 4294901760
        %976 = vmatpush.msra.mxu0 %v975
        %v977 = vand.u32 %v642, 4294901760
        %978 = vmatpush.msra.mxu0 %v977
        %v979 = vand.u32 %v641, 4294901760
        %980 = vmatpush.msra.mxu0 %v979
        %v981 = vand.u32 %v640, 4294901760
        %982 = vmatpush.msra.mxu0 %v981
        %v983 = vand.u32 %v639, 4294901760
        %984 = vmatpush.msra.mxu0 %v983
        %v985 = vand.u32 %v638, 4294901760
        %986 = vmatpush.msra.mxu0 %v985
        %v987 = vand.u32 %v637, 4294901760
        %988 = vmatpush.msra.mxu0 %v987
        %v989 = vand.u32 %v636, 4294901760
        %990 = vmatpush.msra.mxu0 %v989
        %v991 = vand.u32 %v635, 4294901760
        %992 = vmatpush.msra.mxu0 %v991
        %v993 = vand.u32 %v634, 4294901760
        %994 = vmatpush.msra.mxu0 %v993
        %v995 = vand.u32 %v633, 4294901760
        %996 = vmatpush.msra.mxu0 %v995
        %v997 = vand.u32 %v632, 4294901760
        %998 = vmatpush.msra.mxu0 %v997
        %v999 = vand.u32 %v631, 4294901760
        %1000 = vmatpush.msra.mxu0 %v999
        %v1001 = vand.u32 %v630, 4294901760
        %1002 = vmatpush.msra.mxu0 %v1001
        %v1003 = vand.u32 %v629, 4294901760
        %1004 = vmatpush.msra.mxu0 %v1003
        %v1005 = vand.u32 %v628, 4294901760
        %1006 = vmatpush.msra.mxu0 %v1005
        %v1007 = vand.u32 %v669, 4294901760
        %1008 = vmatmul.f32.gmra.mxu0 %v1007
        %v1009 = vpop.f32.mrf.mxu0
        %v1010 = vadd.f32 %v973, %v1009
        %1011 = vdwg.mxu0
        %v1013 = vrot.slane %v1010, 1
        %v1014 = vrot.slane %v1010, 2
        %v1015 = vrot.slane %v1010, 3
        %v1016 = vrot.slane %v1010, 4
        %v1017 = vrot.slane %v1010, 5
        %v1018 = vrot.slane %v1010, 6
        %v1019 = vrot.slane %v1010, 7
        %v1020 = vperm.slane %v1010, 0
        %v1021 = vperm.slane %v1013, 0
        %v1022 = vperm.slane %v1014, 0
        %v1023 = vperm.slane %v1015, 0
        %v1024 = vperm.slane %v1016, 0
        %v1025 = vperm.slane %v1017, 0
        %v1026 = vperm.slane %v1018, 0
        %v1027 = vperm.slane %v1019, 0
        %v1036 = vld [vmem:[%s431] sm:$0xff]
        %v1037 = vld [vmem:[%s431 + $0x8] sm:$0xff]
        %v1038 = vld [vmem:[%s431 + $0x10] sm:$0xff]
        %v1039 = vld [vmem:[%s431 + $0x18] sm:$0xff]
        %v1040 = vld [vmem:[%s431 + $0x20] sm:$0xff]
        %v1041 = vld [vmem:[%s431 + $0x28] sm:$0xff]
        %v1042 = vld [vmem:[%s431 + $0x30] sm:$0xff]
        %v1043 = vld [vmem:[%s431 + $0x38] sm:$0xff]
        %v1044 = vmul.f32 %v1036, %v1020
        %v1045 = vmul.f32 %v1037, %v1021
        %v1046 = vmul.f32 %v1038, %v1022
        %v1047 = vmul.f32 %v1039, %v1023
        %v1048 = vmul.f32 %v1040, %v1024
        %v1049 = vmul.f32 %v1041, %v1025
        %v1050 = vmul.f32 %v1042, %v1026
        %v1051 = vmul.f32 %v1043, %v1027
        %1052 = vst [vmem:[%s524] sm:$0xff] %v1044
        %1053 = vst [vmem:[%s524 + $0x8] sm:$0xff] %v1045
        %1054 = vst [vmem:[%s524 + $0x10] sm:$0xff] %v1046
        %1055 = vst [vmem:[%s524 + $0x18] sm:$0xff] %v1047
        %1056 = vst [vmem:[%s524 + $0x20] sm:$0xff] %v1048
        %1057 = vst [vmem:[%s524 + $0x28] sm:$0xff] %v1049
        %1058 = vst [vmem:[%s524 + $0x30] sm:$0xff] %v1050
        %1059 = vst [vmem:[%s524 + $0x38] sm:$0xff] %v1051
        %v1060 = vld [vmem:[%s441] sm:$0xff]
        %v1061 = vld [vmem:[%s441 + $0x8] sm:$0xff]
        %v1062 = vld [vmem:[%s441 + $0x10] sm:$0xff]
        %v1063 = vld [vmem:[%s441 + $0x18] sm:$0xff]
        %v1064 = vld [vmem:[%s441 + $0x20] sm:$0xff]
        %v1065 = vld [vmem:[%s441 + $0x28] sm:$0xff]
        %v1066 = vld [vmem:[%s441 + $0x30] sm:$0xff]
        %v1067 = vld [vmem:[%s441 + $0x38] sm:$0xff]
        %v1068 = vmul.f32 %v1060, %v1020
        %v1069 = vmul.f32 %v1061, %v1021
        %v1070 = vmul.f32 %v1062, %v1022
        %v1071 = vmul.f32 %v1063, %v1023
        %v1072 = vmul.f32 %v1064, %v1024
        %v1073 = vmul.f32 %v1065, %v1025
        %v1074 = vmul.f32 %v1066, %v1026
        %v1075 = vmul.f32 %v1067, %v1027
        %1076 = vst [vmem:[%s531] sm:$0xff] %v1068
        %1077 = vst [vmem:[%s531 + $0x8] sm:$0xff] %v1069
        %1078 = vst [vmem:[%s531 + $0x10] sm:$0xff] %v1070
        %1079 = vst [vmem:[%s531 + $0x18] sm:$0xff] %v1071
        %1080 = vst [vmem:[%s531 + $0x20] sm:$0xff] %v1072
        %1081 = vst [vmem:[%s531 + $0x28] sm:$0xff] %v1073
        %1082 = vst [vmem:[%s531 + $0x30] sm:$0xff] %v1074
        %1083 = vst [vmem:[%s531 + $0x38] sm:$0xff] %v1075
        %s1084 = sand.u32 %s233, 1
        %s1085 = scalar_lea.sflag [#allocation4], %s1084
        %s1086 = sand.u32 %s233, 1
        %s1087 = smul.addr %s1086, 64
        %s1088 = scalar_lea.vmem [#allocation14], %s1087
        %s1089 = sand.u32 %s259, 1
        %s1090 = scalar_lea.sflag [#allocation16], %s1089
        %s1091 = sand.u32 %s259, 1
        %s1092 = smul.addr %s1091, 64
        %s1093 = scalar_lea.vmem [#allocation15], %s1092
        // Predicated region
        $region81: #{tpu_custom_call.1} parent=51 // pred_check
          %p1094 = pneg %p243
        $region82: #{tpu_custom_call.1} parent=51 // pred_check_branch
          %1096 = sbr.rel (%p1094) target = $region84
        $region83: #{tpu_custom_call.1} parent=51 // pred_region
          %s1097 = smul.u32 8, %s37
          %1099 = vsyncadd %s1085, 0
          %s1100 = smul.addr %s1097, 8
          %s1101 = scalar_lea.hbm %s8, %s1100
          %s1102 = sshll.u32 %s1088, 4
          %s1103 = int_to_ptr.vmem [resolvable:$true] %s1102
          %s1104 = sshll.u32 %s1101, 4
          %s1105 = int_to_ptr.hbm [resolvable:$true] %s1104
          %1110 = dma.vmem_to_hbm [thread:$0]  %s1103, 1024, %s1105, %s1085, 128, 128, 8
        $region84: #{tpu_custom_call.1} parent=51 // pred_fallthru
          _
        // Predicated region
        $region85: #{tpu_custom_call.1} parent=51 // pred_check
          %p1111 = pneg %p269
        $region86: #{tpu_custom_call.1} parent=51 // pred_check_branch
          %1113 = sbr.rel (%p1111) target = $region88
        $region87: #{tpu_custom_call.1} parent=51 // pred_region
          %s1114 = smul.u32 8, %s37
          %1116 = vsyncadd %s1090, 0
          %s1117 = smul.addr %s1114, 8
          %s1118 = scalar_lea.hbm %s9, %s1117
          %s1119 = sshll.u32 %s1093, 4
          %s1120 = int_to_ptr.vmem [resolvable:$true] %s1119
          %s1121 = sshll.u32 %s1118, 4
          %s1122 = int_to_ptr.hbm [resolvable:$true] %s1121
          %1127 = dma.vmem_to_hbm [thread:$0]  %s1120, 1024, %s1122, %s1090, 128, 128, 8
        $region88: #{tpu_custom_call.1} parent=51 // pred_fallthru
          _
      $region52: #{tpu_custom_call.1} parent=5 // pred_fallthru
        _
      %p1128 = scmp.le.s32.totalorder 2, %s32
      // Predicated region
      $region89: #{tpu_custom_call.1} parent=5 // pred_check
        %p1129 = pneg %p1128
      $region90: #{tpu_custom_call.1} parent=5 // pred_check_branch
        %1131 = sbr.rel (%p1129) target = $region92
      $region91: #{tpu_custom_call.1} parent=5 // pred_region
        %s1132 = ssub.s32 %s32, 2
        // Predicated region
        $region93: #{tpu_custom_call.1} parent=91 // pred_check
          %p1133 = pneg %p249
        $region94: #{tpu_custom_call.1} parent=91 // pred_check_branch
          %1135 = sbr.rel (%p1133) target = $region96
        $region95: #{tpu_custom_call.1} parent=91 // pred_region
          %s1136 = sand.u32 %s234, 1
          %s1137 = scalar_lea.sflag [#allocation4], %s1136
          %s1138 = sand.u32 %s234, 1
          %s1139 = smul.addr %s1138, 64
          %s1140 = scalar_lea.vmem [#allocation14], %s1139
          %1142 = dma.done %s1137, 1024
        $region96: #{tpu_custom_call.1} parent=91 // pred_fallthru
          _
        // Predicated region
        $region97: #{tpu_custom_call.1} parent=91 // pred_check
          %p1143 = pneg %p275
        $region98: #{tpu_custom_call.1} parent=91 // pred_check_branch
          %1145 = sbr.rel (%p1143) target = $region100
        $region99: #{tpu_custom_call.1} parent=91 // pred_region
          %s1146 = sand.u32 %s260, 1
          %s1147 = scalar_lea.sflag [#allocation16], %s1146
          %s1148 = sand.u32 %s260, 1
          %s1149 = smul.addr %s1148, 64
          %s1150 = scalar_lea.vmem [#allocation15], %s1149
          %1152 = dma.done %s1147, 1024
        $region100: #{tpu_custom_call.1} parent=91 // pred_fallthru
          _
      $region92: #{tpu_custom_call.1} parent=5 // pred_fallthru
        _
    $region6: #{tpu_custom_call.1} parent=1 // loop_footer
      %s36 = sadd.s32 1, %s32
    $region7: #{tpu_custom_call.1} parent=1 // loop_footer_branch
      %31 = sbr.rel target = $region3
    $region8: #{tpu_custom_call.1} parent=1 // loop_exit
      _
    %1153 = vsyncpa [#allocation3], 1
    %s1154 = scalar_lea.sflag [#allocation3], 1
    %1155 = vsyncpa %s1154, 1
    %1156 = vsyncpa [#allocation6], 1
    %s1157 = scalar_lea.sflag [#allocation6], 1
    %1158 = vsyncpa %s1157, 1
    %1159 = vsyncpa [#allocation9], 1
    %s1160 = scalar_lea.sflag [#allocation9], 1
    %1161 = vsyncpa %s1160, 1
    %1162 = vsyncpa [#allocation12], 1
    %1163 = vsyncpa [#allocation4], 1
    %s1164 = scalar_lea.sflag [#allocation4], 1
    %1165 = vsyncpa %s1164, 1
    %1166 = vsyncpa [#allocation16], 1
    %s1167 = scalar_lea.sflag [#allocation16], 1
    %1168 = vsyncpa %s1167, 1

</llo_original>
